<compile_context>
chip_gen: v5e
topology: v5e:2x2
jax: 0.10.0
libtpu: 0.0.40
codegen_flags: <defaults>
</compile_context>

<pallas_src>
import functools
import math

import jax
import jax.numpy as jnp
from jax.experimental import pallas as pl
from jax.experimental.pallas import tpu as pltpu

TWO_PI = 2.0 * math.pi
UNVOICED_SYMBOL = 0.0


# ----------------------------------------------------------------------------- helpers
def _shift_right_zero(x, k):
    """Shift x right by k along the last axis, zero-filled (static k).

    Implemented as an aligned zero-concat followed by a static slice so it lowers
    cleanly both in compiled Mosaic and in interpret mode.
    """
    bt, lt = x.shape
    xp = jnp.concatenate([jnp.zeros_like(x), x], axis=-1)   # (bt, 2*lt), aligned concat
    return xp[:, lt - k: 2 * lt - k]


# ----------------------------------------------------------------------------- kernel
def _excite_kernel(*refs, voiced_region, unvoiced_region, lt):
    if unvoiced_region == "gauss":
        pm_ref, mask_ref, noise_ref, out_ref, s_c, b_c, r_c = refs
    else:
        pm_ref, mask_ref, out_ref, s_c, b_c, r_c = refs
        noise_ref = None

    l_id = pl.program_id(1)

    # Reset per-row carries at the first sample tile of each batch tile.
    @pl.when(l_id == 0)
    def _():
        s_c[...] = jnp.zeros_like(s_c)
        b_c[...] = jnp.zeros_like(b_c)
        r_c[...] = jnp.zeros_like(r_c)

    pm = pm_ref[...]            # masked, interpolated pitch (B_t, L_t)
    m = mask_ref[...]           # sample-level voiced mask, 0/1 float

    voiced = pm > 0.0
    q = jnp.where(voiced, 1.0 / jnp.where(voiced, pm, 1.0), 0.0)

    # Inclusive within-tile cumsum of q (Hillis-Steele), then add the running carry.
    s_loc = q
    k = 1
    while k < lt:
        s_loc = s_loc + _shift_right_zero(s_loc, k)
        k *= 2
    s = s_loc + s_c[...]                                   # (B_t, L_t) global cumsum

    # Inclusive within-tile cummax of s * ~mask (all values >= 0, so zero-fill is a
    # valid identity), then combine with the running-max carry.
    v = s * (1.0 - m)
    k = 1
    while k < lt:
        v = jnp.maximum(v, _shift_right_zero(v, k))
        k *= 2
    bias = jnp.maximum(v, b_c[...])

    phase = s - bias

    if voiced_region == "pulse":
        r = jnp.ceil(phase)
        lane = jax.lax.broadcasted_iota(jnp.int32, r.shape, 1)
        r_prev = jnp.where(lane == 0, r_c[...], _shift_right_zero(r, 1))
        pulse = (r - r_prev) >= 1.0
        e = jnp.where(pulse, jnp.sqrt(jnp.maximum(pm, 0.0)), 0.0)
        r_c[...] = r[:, lt - 1: lt]
    elif voiced_region == "sinusoidal":
        e = jnp.sin(TWO_PI * phase)
    else:  # sawtooth: fmod(phase, 2) - 1; phase >= 0 so floor-mod == fmod
        e = phase - 2.0 * jnp.floor(phase * 0.5) - 1.0

    if unvoiced_region == "gauss":
        e = jnp.where(m > 0.0, e, noise_ref[...])
    # 'zeros': leave e untouched on unvoiced samples (matches torch's no-op branch)

    # Carries for the next sample tile.
    s_c[...] = s[:, lt - 1: lt]
    b_c[...] = bias[:, lt - 1: lt]

    out_ref[...] = e.astype(out_ref.dtype)


# ---------------------------------------------------------------------------- wrapper
def excitation_generation(p, frame_period, voiced_region="pulse",
                          unvoiced_region="gauss", key=None):
    assert frame_period >= 1
    assert voiced_region in ("pulse", "sinusoidal", "sawtooth")
    assert unvoiced_region in ("gauss", "zeros")

    p = jnp.asarray(p, jnp.float32)
    single = p.ndim == 1
    lead = p.shape[:-1]
    N = p.shape[-1]
    p2 = p.reshape((-1, N))
    B = p2.shape[0]
    P = int(frame_period)
    L = N * P

    # ---- glue (plain JAX): frame mask, voiced->unvoiced boundary fix, interpolation
    base = jnp.clip(p2, 0.0, 1.0)
    maskf = base != UNVOICED_SYMBOL                                 # frame voiced mask
    tmp = jnp.pad(base, ((0, 0), (1, 0)))
    drop = (tmp[..., 1:] - tmp[..., :-1]) == -1.0                   # voiced -> unvoiced
    p_fix = jnp.where(drop, jnp.roll(p2, 1, axis=-1), p2)
    ppad = jnp.concatenate([p_fix, p_fix[..., -1:]], axis=-1)       # (B, N+1), repl pad

    frac = jnp.arange(P, dtype=jnp.float32) / P                     # (P,)
    pitch = (ppad[:, :-1, None] * (1.0 - frac)
             + ppad[:, 1:, None] * frac).reshape(B, L)              # (B, L) linear intpl
    mask = jnp.repeat(maskf, P, axis=-1).astype(jnp.float32)        # (B, L) 0/1
    pm = pitch * mask

    # ---- tiling: lane-dense sample tiles, batch rows padded to sublane multiple
    BT = 8
    LT = min(512, 128 * pl.cdiv(L, 128))
    L_pad = LT * pl.cdiv(L, LT)
    B_pad = BT * pl.cdiv(B, BT)

    def _pad(x):
        return jnp.pad(x, ((0, B_pad - B), (0, L_pad - L)))

    inputs = [_pad(pm), _pad(mask)]
    in_specs = [pl.BlockSpec((BT, LT), lambda b, l: (b, l)),
                pl.BlockSpec((BT, LT), lambda b, l: (b, l))]
    if unvoiced_region == "gauss":
        if key is None:
            key = jax.random.PRNGKey(0)
        noise = jax.random.normal(key, (B_pad, L_pad), jnp.float32)
        inputs.append(noise)
        in_specs.append(pl.BlockSpec((BT, LT), lambda b, l: (b, l)))
    # 'zeros': no noise input at all (no wasted HBM read)

    kernel = functools.partial(_excite_kernel, voiced_region=voiced_region,
                               unvoiced_region=unvoiced_region, lt=LT)
    grid_spec = pltpu.PrefetchScalarGridSpec(
        num_scalar_prefetch=0,
        grid=(B_pad // BT, L_pad // LT),
        in_specs=in_specs,
        out_specs=pl.BlockSpec((BT, LT), lambda b, l: (b, l)),
        scratch_shapes=[pltpu.VMEM((BT, 1), jnp.float32) for _ in range(3)],
    )
    e = pl.pallas_call(
        kernel,
        out_shape=jax.ShapeDtypeStruct((B_pad, L_pad), jnp.float32),
        grid_spec=grid_spec,
        compiler_params=pltpu.CompilerParams(
            dimension_semantics=("parallel", "arbitrary"),
            vmem_limit_bytes=32 * 1024 * 1024),
    )(*inputs)

    e = e[:B, :L]
    return e[0] if single else e.reshape(lead + (L,))


# ---------------------------------------------------------------- pure-JAX reference
def _reference(p, P, voiced_region="pulse"):
    """unvoiced_region='zeros' reference; p must be 2-D (B, N)."""
    p = jnp.asarray(p, jnp.float32)
    base = jnp.clip(p, 0.0, 1.0)
    maskf = base != UNVOICED_SYMBOL
    mask = jnp.repeat(maskf, P, axis=-1)
    tmp = jnp.pad(base, ((0, 0), (1, 0)))
    drop = (tmp[..., 1:] - tmp[..., :-1]) == -1.0
    pf = jnp.where(drop, jnp.roll(p, 1, axis=-1), p)
    ppad = jnp.concatenate([pf, pf[..., -1:]], axis=-1)
    frac = jnp.arange(P, dtype=jnp.float32) / P
    pi = (ppad[:, :-1, None] * (1.0 - frac) + ppad[:, 1:, None] * frac).reshape(p.shape[0], -1)
    pm = pi * mask
    q = jnp.where(pm > 0.0, 1.0 / jnp.where(pm > 0.0, pm, 1.0), 0.0)
    s = jnp.cumsum(q, axis=1)
    bias = jax.lax.cummax(s * (~mask), axis=1)   # positive axis (lax rejects negative)
    phase = s - bias
    if voiced_region == "pulse":
        r = jnp.ceil(phase)
        rp = jnp.pad(r, ((0, 0), (1, 0)))
        pulse = (rp[..., 1:] - rp[..., :-1]) >= 1.0
        return jnp.where(pulse, jnp.sqrt(jnp.maximum(pm, 0.0)), 0.0)
    if voiced_region == "sinusoidal":
        return jnp.sin(TWO_PI * phase)
    return phase - 2.0 * jnp.floor(phase * 0.5) - 1.0


# -------------------------------------------------------------------------------- main
if __name__ == "__main__":
    # 1) diffsptk docstring example: p=[2,3], P=3 -> [sqrt(2),0,sqrt(8/3),0,0,sqrt(3)]
    e0 = jax.block_until_ready(
        excitation_generation(jnp.array([2.0, 3.0]), 3, unvoiced_region="zeros"))
    expected = jnp.array([1.4142135, 0.0, 1.6329932, 0.0, 0.0, 1.7320508], jnp.float32)
    assert e0.shape == (6,)
    assert jnp.allclose(e0, expected, atol=1e-3), e0

    key = jax.random.PRNGKey(0)
    k1, k2, k3, k4 = jax.random.split(key, 4)

    # 2) small batched pulse/zeros case vs reference (constant voiced pitch -> exact)
    B, N, P = 2, 8, 4
    voiced = jax.random.bernoulli(k1, 0.7, (B, N))
    p_const = jnp.where(voiced, 32.0, 0.0)
    e2 = jax.block_until_ready(excitation_generation(p_const, P, "pulse", "zeros"))
    assert e2.shape == (B, N * P)
    assert jnp.allclose(e2, _reference(p_const, P, "pulse"), atol=1e-5)

    # 3) multi-tile case (L = 800 -> two 512-wide sample tiles): cross-tile carries
    B3, N3, P3 = 2, 80, 10
    voiced3 = jax.random.bernoulli(k2, 0.7, (B3, N3))
    p3c = jnp.where(voiced3, 32.0, 0.0)
    for region in ("pulse", "sawtooth"):
        e3 = jax.block_until_ready(excitation_generation(p3c, P3, region, "zeros"))
        assert e3.shape == (B3, N3 * P3)
        assert jnp.allclose(e3, _reference(p3c, P3, region), atol=1e-5), region
    pitch3 = jax.random.uniform(k3, (B3, N3), jnp.float32, 16.0, 64.0)
    p3v = jnp.where(voiced3, pitch3, 0.0)
    e3s = jax.block_until_ready(excitation_generation(p3v, P3, "sinusoidal", "zeros"))
    assert jnp.allclose(e3s, _reference(p3v, P3, "sinusoidal"), atol=5e-3)

    # 4) default configuration (pulse voiced region, gaussian unvoiced region)
    p4 = jnp.where(voiced, jax.random.uniform(k4, (B, N), jnp.float32, 16.0, 64.0), 0.0)
    e4z = jax.block_until_ready(excitation_generation(p4, P, "pulse", "zeros"))
    e4g = jax.block_until_ready(excitation_generation(p4, P, "pulse", "gauss", key=k4))
    assert e4g.shape == (B, N * P)
    assert bool(jnp.all(jnp.isfinite(e4g)))
    m4 = jnp.repeat(jnp.clip(p4, 0.0, 1.0) != 0.0, P, axis=-1)
    assert jnp.allclose(jnp.where(m4, e4g, 0.0), jnp.where(m4, e4z, 0.0), atol=1e-6)

    print("KERNEL_OK")
</pallas_src>

<mosaic_0001>
module attributes {stable_mosaic.version = 11 : i64} {
  func.func @_excite_kernel(%arg0: i32, %arg1: i32, %arg2: memref<8x128xf32, #tpu.memory_space<vmem>>, %arg3: memref<8x128xf32, #tpu.memory_space<vmem>>, %arg4: memref<8x128xf32, #tpu.memory_space<vmem>>, %arg5: memref<8x1xf32, #tpu.memory_space<vmem>>, %arg6: memref<8x1xf32, #tpu.memory_space<vmem>>, %arg7: memref<8x1xf32, #tpu.memory_space<vmem>>) attributes {dimension_semantics = [#tpu.dimension_semantics<parallel>, #tpu.dimension_semantics<arbitrary>], iteration_bounds = array<i64: 1, 1>, scalar_prefetch = 0 : i64, scratch_operands = 3 : i64, tpu.core_type = #tpu.core_type<tc>, window_params = [{transform_indices = @transform_0, window_bounds = array<i64: 8, 128>}, {transform_indices = @transform_1, window_bounds = array<i64: 8, 128>}, {transform_indices = @transform_2, window_bounds = array<i64: 8, 128>}]} {
    %c0_i32 = arith.constant 0 : i32
    %0 = arith.cmpi eq, %arg1, %c0_i32 : i32
    %1 = arith.extui %0 : i1 to i32
    %c0_i32_0 = arith.constant 0 : i32
    %2 = arith.cmpi ne, %1, %c0_i32_0 : i32
    scf.if %2 {
      %cst_41 = arith.constant 0.000000e+00 : f32
      %105 = vector.broadcast %cst_41 : f32 to vector<8x1xf32>
      %c0_42 = arith.constant 0 : index
      %c0_43 = arith.constant 0 : index
      %106 = vector.load %arg5[%c0_42, %c0_43] : memref<8x1xf32, #tpu.memory_space<vmem>>, vector<8x1xf32>
      tpu.vector_store %arg5[%c0_42, %c0_43], %105 {strides = array<i32>} : memref<8x1xf32, #tpu.memory_space<vmem>>, vector<8x1xf32>,
      %cst_44 = arith.constant 0.000000e+00 : f32
      %107 = vector.broadcast %cst_44 : f32 to vector<8x1xf32>
      %c0_45 = arith.constant 0 : index
      %c0_46 = arith.constant 0 : index
      %108 = vector.load %arg6[%c0_45, %c0_46] : memref<8x1xf32, #tpu.memory_space<vmem>>, vector<8x1xf32>
      tpu.vector_store %arg6[%c0_45, %c0_46], %107 {strides = array<i32>} : memref<8x1xf32, #tpu.memory_space<vmem>>, vector<8x1xf32>,
      %cst_47 = arith.constant 0.000000e+00 : f32
      %109 = vector.broadcast %cst_47 : f32 to vector<8x1xf32>
      %c0_48 = arith.constant 0 : index
      %c0_49 = arith.constant 0 : index
      %110 = vector.load %arg7[%c0_48, %c0_49] : memref<8x1xf32, #tpu.memory_space<vmem>>, vector<8x1xf32>
      tpu.vector_store %arg7[%c0_48, %c0_49], %109 {strides = array<i32>} : memref<8x1xf32, #tpu.memory_space<vmem>>, vector<8x1xf32>,
    } else {
    }
    %c0 = arith.constant 0 : index
    %c0_1 = arith.constant 0 : index
    %3 = vector.load %arg2[%c0, %c0_1] : memref<8x128xf32, #tpu.memory_space<vmem>>, vector<8x128xf32>
    %c0_2 = arith.constant 0 : index
    %c0_3 = arith.constant 0 : index
    %4 = vector.load %arg3[%c0_2, %c0_3] : memref<8x128xf32, #tpu.memory_space<vmem>>, vector<8x128xf32>
    %cst = arith.constant 0.000000e+00 : f32
    %5 = vector.broadcast %cst : f32 to vector<8x128xf32>
    %6 = arith.cmpf ogt, %3, %5 : vector<8x128xf32>
    %cst_4 = arith.constant 1.000000e+00 : f32
    %7 = vector.broadcast %cst_4 : f32 to vector<8x128xf32>
    %8 = arith.select %6, %3, %7 : vector<8x128xi1>, vector<8x128xf32>
    %cst_5 = arith.constant 1.000000e+00 : f32
    %9 = vector.broadcast %cst_5 : f32 to vector<8x128xf32>
    %10 = arith.divf %9, %8 : vector<8x128xf32>
    %cst_6 = arith.constant 0.000000e+00 : f32
    %11 = vector.broadcast %cst_6 : f32 to vector<8x128xf32>
    %12 = arith.select %6, %10, %11 : vector<8x128xi1>, vector<8x128xf32>
    %cst_7 = arith.constant 0.000000e+00 : f32
    %13 = vector.broadcast %cst_7 : f32 to vector<8x128xf32>
    %14 = tpu.concatenate %13, %12 in 1 : vector<8x128xf32>, vector<8x128xf32> -> vector<8x256xf32>
    %15 = vector.extract_strided_slice %14 {offsets = [0, 127], sizes = [8, 128], strides = [1, 1]} : vector<8x256xf32> to vector<8x128xf32>
    %16 = arith.addf %12, %15 : vector<8x128xf32>
    %cst_8 = arith.constant 0.000000e+00 : f32
    %17 = vector.broadcast %cst_8 : f32 to vector<8x128xf32>
    %18 = tpu.concatenate %17, %16 in 1 : vector<8x128xf32>, vector<8x128xf32> -> vector<8x256xf32>
    %19 = vector.extract_strided_slice %18 {offsets = [0, 126], sizes = [8, 128], strides = [1, 1]} : vector<8x256xf32> to vector<8x128xf32>
    %20 = arith.addf %16, %19 : vector<8x128xf32>
    %cst_9 = arith.constant 0.000000e+00 : f32
    %21 = vector.broadcast %cst_9 : f32 to vector<8x128xf32>
    %22 = tpu.concatenate %21, %20 in 1 : vector<8x128xf32>, vector<8x128xf32> -> vector<8x256xf32>
    %23 = vector.extract_strided_slice %22 {offsets = [0, 124], sizes = [8, 128], strides = [1, 1]} : vector<8x256xf32> to vector<8x128xf32>
    %24 = arith.addf %20, %23 : vector<8x128xf32>
    %cst_10 = arith.constant 0.000000e+00 : f32
    %25 = vector.broadcast %cst_10 : f32 to vector<8x128xf32>
    %26 = tpu.concatenate %25, %24 in 1 : vector<8x128xf32>, vector<8x128xf32> -> vector<8x256xf32>
    %27 = vector.extract_strided_slice %26 {offsets = [0, 120], sizes = [8, 128], strides = [1, 1]} : vector<8x256xf32> to vector<8x128xf32>
    %28 = arith.addf %24, %27 : vector<8x128xf32>
    %cst_11 = arith.constant 0.000000e+00 : f32
    %29 = vector.broadcast %cst_11 : f32 to vector<8x128xf32>
    %30 = tpu.concatenate %29, %28 in 1 : vector<8x128xf32>, vector<8x128xf32> -> vector<8x256xf32>
    %31 = vector.extract_strided_slice %30 {offsets = [0, 112], sizes = [8, 128], strides = [1, 1]} : vector<8x256xf32> to vector<8x128xf32>
    %32 = arith.addf %28, %31 : vector<8x128xf32>
    %cst_12 = arith.constant 0.000000e+00 : f32
    %33 = vector.broadcast %cst_12 : f32 to vector<8x128xf32>
    %34 = tpu.concatenate %33, %32 in 1 : vector<8x128xf32>, vector<8x128xf32> -> vector<8x256xf32>
    %35 = vector.extract_strided_slice %34 {offsets = [0, 96], sizes = [8, 128], strides = [1, 1]} : vector<8x256xf32> to vector<8x128xf32>
    %36 = arith.addf %32, %35 : vector<8x128xf32>
    %cst_13 = arith.constant 0.000000e+00 : f32
    %37 = vector.broadcast %cst_13 : f32 to vector<8x128xf32>
    %38 = tpu.concatenate %37, %36 in 1 : vector<8x128xf32>, vector<8x128xf32> -> vector<8x256xf32>
    %39 = vector.extract_strided_slice %38 {offsets = [0, 64], sizes = [8, 128], strides = [1, 1]} : vector<8x256xf32> to vector<8x128xf32>
    %40 = arith.addf %36, %39 : vector<8x128xf32>
    %c0_14 = arith.constant 0 : index
    %c0_15 = arith.constant 0 : index
    %41 = vector.load %arg5[%c0_14, %c0_15] : memref<8x1xf32, #tpu.memory_space<vmem>>, vector<8x1xf32>
    %42 = vector.broadcast %41 : vector<8x1xf32> to vector<8x128xf32>
    %43 = arith.addf %40, %42 : vector<8x128xf32>
    %cst_16 = arith.constant 1.000000e+00 : f32
    %44 = vector.broadcast %cst_16 : f32 to vector<8x128xf32>
    %45 = arith.subf %44, %4 : vector<8x128xf32>
    %46 = arith.mulf %43, %45 : vector<8x128xf32>
    %cst_17 = arith.constant 0.000000e+00 : f32
    %47 = vector.broadcast %cst_17 : f32 to vector<8x128xf32>
    %48 = tpu.concatenate %47, %46 in 1 : vector<8x128xf32>, vector<8x128xf32> -> vector<8x256xf32>
    %49 = vector.extract_strided_slice %48 {offsets = [0, 127], sizes = [8, 128], strides = [1, 1]} : vector<8x256xf32> to vector<8x128xf32>
    %50 = arith.maximumf %46, %49 : vector<8x128xf32>
    %cst_18 = arith.constant 0.000000e+00 : f32
    %51 = vector.broadcast %cst_18 : f32 to vector<8x128xf32>
    %52 = tpu.concatenate %51, %50 in 1 : vector<8x128xf32>, vector<8x128xf32> -> vector<8x256xf32>
    %53 = vector.extract_strided_slice %52 {offsets = [0, 126], sizes = [8, 128], strides = [1, 1]} : vector<8x256xf32> to vector<8x128xf32>
    %54 = arith.maximumf %50, %53 : vector<8x128xf32>
    %cst_19 = arith.constant 0.000000e+00 : f32
    %55 = vector.broadcast %cst_19 : f32 to vector<8x128xf32>
    %56 = tpu.concatenate %55, %54 in 1 : vector<8x128xf32>, vector<8x128xf32> -> vector<8x256xf32>
    %57 = vector.extract_strided_slice %56 {offsets = [0, 124], sizes = [8, 128], strides = [1, 1]} : vector<8x256xf32> to vector<8x128xf32>
    %58 = arith.maximumf %54, %57 : vector<8x128xf32>
    %cst_20 = arith.constant 0.000000e+00 : f32
    %59 = vector.broadcast %cst_20 : f32 to vector<8x128xf32>
    %60 = tpu.concatenate %59, %58 in 1 : vector<8x128xf32>, vector<8x128xf32> -> vector<8x256xf32>
    %61 = vector.extract_strided_slice %60 {offsets = [0, 120], sizes = [8, 128], strides = [1, 1]} : vector<8x256xf32> to vector<8x128xf32>
    %62 = arith.maximumf %58, %61 : vector<8x128xf32>
    %cst_21 = arith.constant 0.000000e+00 : f32
    %63 = vector.broadcast %cst_21 : f32 to vector<8x128xf32>
    %64 = tpu.concatenate %63, %62 in 1 : vector<8x128xf32>, vector<8x128xf32> -> vector<8x256xf32>
    %65 = vector.extract_strided_slice %64 {offsets = [0, 112], sizes = [8, 128], strides = [1, 1]} : vector<8x256xf32> to vector<8x128xf32>
    %66 = arith.maximumf %62, %65 : vector<8x128xf32>
    %cst_22 = arith.constant 0.000000e+00 : f32
    %67 = vector.broadcast %cst_22 : f32 to vector<8x128xf32>
    %68 = tpu.concatenate %67, %66 in 1 : vector<8x128xf32>, vector<8x128xf32> -> vector<8x256xf32>
    %69 = vector.extract_strided_slice %68 {offsets = [0, 96], sizes = [8, 128], strides = [1, 1]} : vector<8x256xf32> to vector<8x128xf32>
    %70 = arith.maximumf %66, %69 : vector<8x128xf32>
    %cst_23 = arith.constant 0.000000e+00 : f32
    %71 = vector.broadcast %cst_23 : f32 to vector<8x128xf32>
    %72 = tpu.concatenate %71, %70 in 1 : vector<8x128xf32>, vector<8x128xf32> -> vector<8x256xf32>
    %73 = vector.extract_strided_slice %72 {offsets = [0, 64], sizes = [8, 128], strides = [1, 1]} : vector<8x256xf32> to vector<8x128xf32>
    %74 = arith.maximumf %70, %73 : vector<8x128xf32>
    %c0_24 = arith.constant 0 : index
    %c0_25 = arith.constant 0 : index
    %75 = vector.load %arg6[%c0_24, %c0_25] : memref<8x1xf32, #tpu.memory_space<vmem>>, vector<8x1xf32>
    %76 = vector.broadcast %75 : vector<8x1xf32> to vector<8x128xf32>
    %77 = arith.maximumf %74, %76 : vector<8x128xf32>
    %78 = arith.subf %43, %77 : vector<8x128xf32>
    %79 = math.ceil %78 : vector<8x128xf32>
    %80 = tpu.iota {dimensions = array<i32: 1>} : vector<8x128xi32>
    %c0_i32_26 = arith.constant 0 : i32
    %81 = vector.broadcast %c0_i32_26 : i32 to vector<8x128xi32>
    %82 = arith.cmpi eq, %80, %81 : vector<8x128xi32>
    %c0_27 = arith.constant 0 : index
    %c0_28 = arith.constant 0 : index
    %83 = vector.load %arg7[%c0_27, %c0_28] : memref<8x1xf32, #tpu.memory_space<vmem>>, vector<8x1xf32>
    %cst_29 = arith.constant 0.000000e+00 : f32
    %84 = vector.broadcast %cst_29 : f32 to vector<8x128xf32>
    %85 = tpu.concatenate %84, %79 in 1 : vector<8x128xf32>, vector<8x128xf32> -> vector<8x256xf32>
    %86 = vector.extract_strided_slice %85 {offsets = [0, 127], sizes = [8, 128], strides = [1, 1]} : vector<8x256xf32> to vector<8x128xf32>
    %87 = vector.shape_cast %83 : vector<8x1xf32> to vector<8x1xf32>
    %88 = vector.broadcast %87 : vector<8x1xf32> to vector<8x128xf32>
    %89 = arith.select %82, %88, %86 : vector<8x128xi1>, vector<8x128xf32>
    %90 = arith.subf %79, %89 : vector<8x128xf32>
    %cst_30 = arith.constant 1.000000e+00 : f32
    %91 = vector.broadcast %cst_30 : f32 to vector<8x128xf32>
    %92 = arith.cmpf oge, %90, %91 : vector<8x128xf32>
    %cst_31 = arith.constant 0.000000e+00 : f32
    %93 = vector.broadcast %cst_31 : f32 to vector<8x128xf32>
    %94 = arith.maximumf %3, %93 : vector<8x128xf32>
    %95 = math.sqrt %94 : vector<8x128xf32>
    %cst_32 = arith.constant 0.000000e+00 : f32
    %96 = vector.broadcast %cst_32 : f32 to vector<8x128xf32>
    %97 = arith.select %92, %95, %96 : vector<8x128xi1>, vector<8x128xf32>
    %98 = vector.extract_strided_slice %79 {offsets = [0, 127], sizes = [8, 1], strides = [1, 1]} : vector<8x128xf32> to vector<8x1xf32>
    %c0_33 = arith.constant 0 : index
    %c0_34 = arith.constant 0 : index
    %99 = vector.load %arg7[%c0_33, %c0_34] : memref<8x1xf32, #tpu.memory_space<vmem>>, vector<8x1xf32>
    tpu.vector_store %arg7[%c0_33, %c0_34], %98 {strides = array<i32>} : memref<8x1xf32, #tpu.memory_space<vmem>>, vector<8x1xf32>,
    %100 = vector.extract_strided_slice %43 {offsets = [0, 127], sizes = [8, 1], strides = [1, 1]} : vector<8x128xf32> to vector<8x1xf32>
    %c0_35 = arith.constant 0 : index
    %c0_36 = arith.constant 0 : index
    %101 = vector.load %arg5[%c0_35, %c0_36] : memref<8x1xf32, #tpu.memory_space<vmem>>, vector<8x1xf32>
    tpu.vector_store %arg5[%c0_35, %c0_36], %100 {strides = array<i32>} : memref<8x1xf32, #tpu.memory_space<vmem>>, vector<8x1xf32>,
    %102 = vector.extract_strided_slice %77 {offsets = [0, 127], sizes = [8, 1], strides = [1, 1]} : vector<8x128xf32> to vector<8x1xf32>
    %c0_37 = arith.constant 0 : index
    %c0_38 = arith.constant 0 : index
    %103 = vector.load %arg6[%c0_37, %c0_38] : memref<8x1xf32, #tpu.memory_space<vmem>>, vector<8x1xf32>
    tpu.vector_store %arg6[%c0_37, %c0_38], %102 {strides = array<i32>} : memref<8x1xf32, #tpu.memory_space<vmem>>, vector<8x1xf32>,
    %c0_39 = arith.constant 0 : index
    %c0_40 = arith.constant 0 : index
    %104 = vector.load %arg4[%c0_39, %c0_40] : memref<8x128xf32, #tpu.memory_space<vmem>>, vector<8x128xf32>
    tpu.vector_store %arg4[%c0_39, %c0_40], %97 {strides = array<i32>} : memref<8x128xf32, #tpu.memory_space<vmem>>, vector<8x128xf32>,
    return
  }
  func.func @transform_0(%arg0: i32, %arg1: i32) -> (i32, i32) {
    %c0_i32 = arith.constant 0 : i32
    return %arg0, %arg1 : i32, i32
  }
  func.func @transform_1(%arg0: i32, %arg1: i32) -> (i32, i32) {
    %c0_i32 = arith.constant 0 : i32
    return %arg0, %arg1 : i32, i32
  }
  func.func @transform_2(%arg0: i32, %arg1: i32) -> (i32, i32) {
    %c0_i32 = arith.constant 0 : i32
    return %arg0, %arg1 : i32, i32
  }
}

</mosaic_0001>

<llo_original>
// kernel: tpu_custom_call.1
$region0: #{tpu_custom_call.1}
  #allocation0 [shape = 'u32[]', space=smem, size = 0x4, offset = 0x4, fixed_abs, tag = 'smem constant byte address 0x4 - core index']
  #allocation1 [shape = 'u32[72,128]{1,0:T(1,128)}', space=vmem, size = 0x9000, scoped, tag = 'internal scratch']
  #allocation2 [shape = 'f32[8,1]{1,0:T(8,128)}', space=vmem, size = 0x1000, scoped, tag = 'scratch operand']
  #allocation3 [shape = 'f32[8,1]{1,0:T(8,128)}', space=vmem, size = 0x1000, scoped, tag = 'scratch operand']
  #allocation4 [shape = 'f32[8,1]{1,0:T(8,128)}', space=vmem, size = 0x1000, scoped, tag = 'scratch operand']
  %s0 = inlined_call_operand.hbm [shape: f32[8,128], index: 0, kind: input, shape index: {}]
  %s1 = inlined_call_operand.hbm [shape: f32[8,128], index: 1, kind: input, shape index: {}]
  %s2 = inlined_call_operand.hbm [shape: f32[8,128], index: 2, kind: output, shape index: {}]
  %s3 = sld [smem:[#allocation0]]
  $region30: #{tpu_custom_call.1} parent=0
    _
  %s5 = ssub.s32 1, %s3
  %s6 = scalar_select 0, %s5, %s3
  $region1: #{tpu_custom_call.1} parent=0
    #allocation5 [shape = 'u8[4096]{0}', space=vmem, size = 0x1000, scoped, tag = 'input window, operand 0, single buffered']
    #allocation6 [shape = 's32[1]{0}', space=sflag, size = 0x4, scoped, tag = 'scoped memory for tpu_custom_call.1']
    #allocation7 [shape = 's32[1]{0}', space=sflag, size = 0x4, scoped, tag = 'scoped memory for tpu_custom_call.1']
    #allocation8 [shape = 'u8[4096]{0}', space=vmem, size = 0x1000, scoped, tag = 'input window, operand 1, single buffered']
    #allocation9 [shape = 's32[1]{0}', space=sflag, size = 0x4, scoped, tag = 'scoped memory for tpu_custom_call.1']
    #allocation10 [shape = 'u8[4096]{0}', space=vmem, size = 0x1000, scoped, tag = 'output window, operand 0, single buffered']
    %7 = vsyncpa [#allocation6], 0
    %8 = vsyncpa [#allocation9], 0
    %9 = vsyncpa [#allocation7], 0
    // Predicated region
    $region2: #{tpu_custom_call.1} parent=1 // pred_check
      _
    $region3: #{tpu_custom_call.1} parent=1 // pred_check_branch
      %11 = sbr.rel (0) target = $region5
    $region4: #{tpu_custom_call.1} parent=1 // pred_region
      %13 = vsyncadd [#allocation6], 0
      %s15 = sshll.u32 %s0, 4
      %s16 = int_to_ptr.hbm [resolvable:$true] %s15
      %s17 = sshll.u32 [#allocation5], 4
      %s18 = int_to_ptr.vmem [resolvable:$true] %s17
      %20 = dma.hbm_to_vmem [thread:$0]  %s16, 128, %s18, [#allocation6]
    $region5: #{tpu_custom_call.1} parent=1 // pred_fallthru
      _
    // Predicated region
    $region6: #{tpu_custom_call.1} parent=1 // pred_check
      _
    $region7: #{tpu_custom_call.1} parent=1 // pred_check_branch
      %22 = sbr.rel (0) target = $region9
    $region8: #{tpu_custom_call.1} parent=1 // pred_region
      %24 = vsyncadd [#allocation9], 0
      %s26 = sshll.u32 %s1, 4
      %s27 = int_to_ptr.hbm [resolvable:$true] %s26
      %s28 = sshll.u32 [#allocation8], 4
      %s29 = int_to_ptr.vmem [resolvable:$true] %s28
      %31 = dma.hbm_to_vmem [thread:$0]  %s27, 128, %s29, [#allocation9]
    $region9: #{tpu_custom_call.1} parent=1 // pred_fallthru
      _
    // Predicated region
    $region10: #{tpu_custom_call.1} parent=1 // pred_check
      _
    $region11: #{tpu_custom_call.1} parent=1 // pred_check_branch
      %33 = sbr.rel (0) target = $region13
    $region12: #{tpu_custom_call.1} parent=1 // pred_region
      %35 = dma.done [#allocation6], 128
    $region13: #{tpu_custom_call.1} parent=1 // pred_fallthru
      _
    // Predicated region
    $region14: #{tpu_custom_call.1} parent=1 // pred_check
      _
    $region15: #{tpu_custom_call.1} parent=1 // pred_check_branch
      %37 = sbr.rel (0) target = $region17
    $region16: #{tpu_custom_call.1} parent=1 // pred_region
      %39 = dma.done [#allocation9], 128
    $region17: #{tpu_custom_call.1} parent=1 // pred_fallthru
      _
    %p40 = scmp.eq.s32.totalorder 0, 0
    // Predicated region
    $region18: #{tpu_custom_call.1} parent=1 // pred_check
      %p41 = pneg %p40
    $region19: #{tpu_custom_call.1} parent=1 // pred_check_branch
      %43 = sbr.rel (%p41) target = $region21
    $region20: #{tpu_custom_call.1} parent=1 // pred_region
      %vm44 = vcmask 7168
      %45 = vst.msk [vmem:[#allocation2] sm:$0xff] %vm44, 0.0
      %46 = vst.msk [vmem:[#allocation3] sm:$0xff] %vm44, 0.0
      %47 = vst.msk [vmem:[#allocation4] sm:$0xff] %vm44, 0.0
    $region21: #{tpu_custom_call.1} parent=1 // pred_fallthru
      _
    %v48 = vld [vmem:[#allocation5] sm:$0xff]
    %v49 = vld [vmem:[#allocation8] sm:$0xff]
    %vm50 = vcmp.gt.f32.partialorder %v48, 0.0
    %v51 = vsel %vm50, %v48, 1.0
    %v52 = vrcp.pop %v51
    %v53 = vmul.f32 %v51, %v52
    %v54 = vsub.f32 1.0, %v53
    %v55 = vmul.f32 %v52, %v54
    %v56 = vadd.f32 %v52, %v55
    %vm57 = vweird.f32 %v51
    %vm58 = vweird.f32 %v52
    %vm59 = vmor %vm57, %vm58
    %v60 = vsel %vm59, %v52, %v56
    %v61 = vand.u32 2147483647, %v51
    %vm62 = vcmp.eq.f32.partialorder %v61, 8.507059e+37
    %v63 = vand.u32 %v51, 2147483648
    %v64 = vor.u32 1.1754944e-38, %v63
    %v65 = vsel %vm62, %v64, %v60
    %v66 = vmul.f32 1.0, %v65
    %v67 = vsel %vm50, %v66, 0.0
    %70 = vrot.lane.b32.xlu0 0.0, 1
    %v71 = vpop.permute.xlu0 %70
    %72 = vrot.lane.b32.xlu0 %v67, 1
    %v73 = vpop.permute.xlu0 %72
    %vm74 = vcmask 7168
    %v75 = vsel %vm74, %v71, %v73
    %v77 = vadd.f32 %v67, %v75
    %79 = vrot.lane.b32.xlu0 0.0, 2
    %v80 = vpop.permute.xlu0 %79
    %81 = vrot.lane.b32.xlu0 %v77, 2
    %v82 = vpop.permute.xlu0 %81
    %vm83 = vcmask 15360
    %v84 = vsel %vm83, %v80, %v82
    %v86 = vadd.f32 %v77, %v84
    %88 = vrot.lane.b32.xlu0 0.0, 4
    %v89 = vpop.permute.xlu0 %88
    %90 = vrot.lane.b32.xlu0 %v86, 4
    %v91 = vpop.permute.xlu0 %90
    %vm92 = vcmask 31744
    %v93 = vsel %vm92, %v89, %v91
    %v95 = vadd.f32 %v86, %v93
    %97 = vrot.lane.b32.xlu0 0.0, 8
    %v98 = vpop.permute.xlu0 %97
    %99 = vrot.lane.b32.xlu0 %v95, 8
    %v100 = vpop.permute.xlu0 %99
    %vm101 = vcmask 64512
    %v102 = vsel %vm101, %v98, %v100
    %v104 = vadd.f32 %v95, %v102
    %106 = vrot.lane.b32.xlu0 0.0, 16
    %v107 = vpop.permute.xlu0 %106
    %108 = vrot.lane.b32.xlu0 %v104, 16
    %v109 = vpop.permute.xlu0 %108
    %vm110 = vcmask 130048
    %v111 = vsel %vm110, %v107, %v109
    %v113 = vadd.f32 %v104, %v111
    %115 = vrot.lane.b32.xlu0 0.0, 32
    %v116 = vpop.permute.xlu0 %115
    %117 = vrot.lane.b32.xlu0 %v113, 32
    %v118 = vpop.permute.xlu0 %117
    %vm119 = vcmask 261120
    %v120 = vsel %vm119, %v116, %v118
    %v122 = vadd.f32 %v113, %v120
    %124 = vrot.lane.b32.xlu0 0.0, 64
    %v125 = vpop.permute.xlu0 %124
    %126 = vrot.lane.b32.xlu0 %v122, 64
    %v127 = vpop.permute.xlu0 %126
    %vm128 = vcmask 523264
    %v129 = vsel %vm128, %v125, %v127
    %v131 = vadd.f32 %v122, %v129
    %v132 = vld [vmem:[#allocation2] sm:$0xff]
    %134 = vset.pattern.permute.xlu0 0
    %135 = vperm.xlu0 %134, %v132
    %v136 = vpop.permute.xlu0 %135
    %v138 = vadd.f32 %v131, %v136
    %v139 = vsub.f32 1.0, %v49
    %v140 = vmul.f32 %v138, %v139
    %142 = vrot.lane.b32.xlu0 %v140, 1
    %v143 = vpop.permute.xlu0 %142
    %v144 = vsel %vm74, %v71, %v143
    %v146 = vmax.f32 %v140, %v144
    %148 = vrot.lane.b32.xlu0 %v146, 2
    %v149 = vpop.permute.xlu0 %148
    %v150 = vsel %vm83, %v80, %v149
    %v152 = vmax.f32 %v146, %v150
    %154 = vrot.lane.b32.xlu0 %v152, 4
    %v155 = vpop.permute.xlu0 %154
    %v156 = vsel %vm92, %v89, %v155
    %v158 = vmax.f32 %v152, %v156
    %160 = vrot.lane.b32.xlu0 %v158, 8
    %v161 = vpop.permute.xlu0 %160
    %v162 = vsel %vm101, %v98, %v161
    %v164 = vmax.f32 %v158, %v162
    %166 = vrot.lane.b32.xlu0 %v164, 16
    %v167 = vpop.permute.xlu0 %166
    %v168 = vsel %vm110, %v107, %v167
    %v170 = vmax.f32 %v164, %v168
    %172 = vrot.lane.b32.xlu0 %v170, 32
    %v173 = vpop.permute.xlu0 %172
    %v174 = vsel %vm119, %v116, %v173
    %v176 = vmax.f32 %v170, %v174
    %178 = vrot.lane.b32.xlu0 %v176, 64
    %v179 = vpop.permute.xlu0 %178
    %v180 = vsel %vm128, %v125, %v179
    %v182 = vmax.f32 %v176, %v180
    %v183 = vld [vmem:[#allocation3] sm:$0xff]
    %185 = vset.pattern.permute.xlu0 0
    %186 = vperm.xlu0 %185, %v183
    %v187 = vpop.permute.xlu0 %186
    %v189 = vmax.f32 %v182, %v187
    %v190 = vsub.f32 %v138, %v189
    %v191 = vceil.f32 %v190
    %v192 = vlaneseq
    %v193 = vand.u32 %v192, 127
    %vm194 = vcmp.eq.s32.totalorder %v193, 0
    %v195 = vld [vmem:[#allocation4] sm:$0xff]
    %197 = vset.pattern.permute.xlu0 0
    %198 = vperm.xlu0 %197, %v195
    %v199 = vpop.permute.xlu0 %198
    %202 = vrot.lane.b32.xlu0 %v191, 1
    %v203 = vpop.permute.xlu0 %202
    %v204 = vsel %vm74, %v71, %v203
    %v206 = vsel %vm194, %v199, %v204
    %v207 = vsub.f32 %v191, %v206
    %vm208 = vcmp.ge.f32.partialorder %v207, 1.0
    %v209 = vmax.f32 %v48, 0.0
    %v210 = vrsqrt.pop %v209
    %v211 = vmul.f32 %v210, %v209
    %v212 = vmul.f32 %v211, %v210
    %v213 = vmul.f32 0.5, %v212
    %v214 = vsub.f32 1.5, %v213
    %v215 = vmul.f32 %v210, %v214
    %v216 = vmul.f32 %v209, %v215
    %vm217 = vcmp.eq.f32.partialorder %v209, inf
    %v218 = vsel %vm217, %v209, %v216
    %vm219 = vcmp.eq.f32.partialorder %v209, 0.0
    %v220 = vand.u32 %v209, 2147483648
    %v221 = vsel %vm219, %v220, %v218
    %v222 = vsel %vm208, %v221, 0.0
    %224 = vst.msk [vmem:[#allocation4] sm:$0xff] %vm74, %v203
    %226 = vrot.lane.b32.xlu0 %v138, 1
    %v227 = vpop.permute.xlu0 %226
    %229 = vst.msk [vmem:[#allocation2] sm:$0xff] %vm74, %v227
    %231 = vrot.lane.b32.xlu0 %v189, 1
    %v232 = vpop.permute.xlu0 %231
    %234 = vst.msk [vmem:[#allocation3] sm:$0xff] %vm74, %v232
    %235 = vst [vmem:[#allocation10] sm:$0xff] %v222
    // Predicated region
    $region22: #{tpu_custom_call.1} parent=1 // pred_check
      _
    $region23: #{tpu_custom_call.1} parent=1 // pred_check_branch
      %237 = sbr.rel (0) target = $region25
    $region24: #{tpu_custom_call.1} parent=1 // pred_region
      %239 = vsyncadd [#allocation7], 0
      %s241 = sshll.u32 [#allocation10], 4
      %s242 = int_to_ptr.vmem [resolvable:$true] %s241
      %s243 = sshll.u32 %s2, 4
      %s244 = int_to_ptr.hbm [resolvable:$true] %s243
      %246 = dma.vmem_to_hbm [thread:$0]  %s242, 128, %s244, [#allocation7]
    $region25: #{tpu_custom_call.1} parent=1 // pred_fallthru
      _
    // Predicated region
    $region26: #{tpu_custom_call.1} parent=1 // pred_check
      _
    $region27: #{tpu_custom_call.1} parent=1 // pred_check_branch
      %248 = sbr.rel (0) target = $region29
    $region28: #{tpu_custom_call.1} parent=1 // pred_region
      %250 = dma.done [#allocation7], 128
    $region29: #{tpu_custom_call.1} parent=1 // pred_fallthru
      _
    %251 = vsyncpa [#allocation6], 1
    %252 = vsyncpa [#allocation9], 1
    %253 = vsyncpa [#allocation7], 1

</llo_original>
